<compile_context>
chip_gen: v6e
topology: v6e:2x2x1
jax: 0.10.0
libtpu: 0.0.40
codegen_flags: <defaults>
</compile_context>

<pallas_src>
import jax
import jax.numpy as jnp
from jax import lax
from jax.experimental import pallas as pl
from jax.experimental.pallas import tpu as pltpu

# Module hyper-parameters (from __init__ defaults)
TEMPERATURE = 0.07
MARGIN = 1.0
ALPHA = 1.0
BETA = 0.5

_NEG_BIG = -1e30
_POS_BIG = 1e30


def _round_up(x, m):
    return ((x + m - 1) // m) * m


def _make_kernel(B, C, TB, TC, temperature, margin):
    inv_t = 1.0 / float(temperature)
    margin = float(margin)

    def kernel(feat_ref, cfeatT_ref, lab_ref, clab_ref,
               sup_out_ref, trip_out_ref,
               fn_s, m_s, l_s, snum_s, msum_s, hp_s, hn_s):
        i = pl.program_id(0)          # B tile ("parallel")
        j = pl.program_id(1)          # C tile ("arbitrary", innermost)

        # ---- per-B-tile init: normalize feature tile once, reset carries ----
        @pl.when(j == 0)
        def _():
            f = feat_ref[...].astype(jnp.float32)                     # (TB, Dp)
            nrm = jnp.sqrt(jnp.sum(f * f, axis=-1, keepdims=True))
            fn_s[...] = f / jnp.maximum(nrm, 1e-12)
            m_s[...] = jnp.full((TB, 1), _NEG_BIG, jnp.float32)
            l_s[...] = jnp.zeros((TB, 1), jnp.float32)
            snum_s[...] = jnp.zeros((TB, 1), jnp.float32)
            msum_s[...] = jnp.zeros((TB, 1), jnp.float32)
            hp_s[...] = jnp.zeros((TB, 1), jnp.float32)
            hn_s[...] = jnp.full((TB, 1), _POS_BIG, jnp.float32)

        # ---- normalize the (Dp, TC) contrast tile column-wise ---------------
        ct = cfeatT_ref[...].astype(jnp.float32)                      # (Dp, TC)
        cnrm = jnp.sqrt(jnp.sum(ct * ct, axis=0, keepdims=True))      # (1, TC)
        ctn = ct / jnp.maximum(cnrm, 1e-12)

        # ---- similarity: lane-major RHS -> straight MXU feed ----------------
        fn = fn_s[...]
        g = jnp.dot(fn, ctn, preferred_element_type=jnp.float32)      # (TB, TC)

        # ---- masks / validity (handles B, C, D zero-padding exactly) --------
        labels = lab_ref[...]                                         # (TB, 1)
        clabels = clab_ref[...]                                       # (1, TC)
        row_ids = lax.broadcasted_iota(jnp.int32, (TB, 1), 0) + i * TB
        col_ids = lax.broadcasted_iota(jnp.int32, (1, TC), 1) + j * TC
        row_valid = row_ids < B                                       # (TB, 1)
        col_valid = col_ids < C                                       # (1, TC)
        maskf = jnp.where(jnp.logical_and(labels == clabels, col_valid),
                          1.0, 0.0)                                   # (TB, TC)

        # ---- SupCon: online log-sum-exp + masked partial sums ---------------
        sim = g * inv_t
        sim_v = jnp.where(col_valid, sim, _NEG_BIG)
        m_old = m_s[...]
        m_new = jnp.maximum(m_old, jnp.max(sim_v, axis=-1, keepdims=True))
        p = jnp.exp(sim_v - m_new)
        corr = jnp.exp(m_old - m_new)
        l_s[...] = l_s[...] * corr + jnp.sum(p, axis=-1, keepdims=True)
        m_s[...] = m_new
        snum_s[...] = snum_s[...] + jnp.sum(maskf * sim, axis=-1, keepdims=True)
        msum_s[...] = msum_s[...] + jnp.sum(maskf, axis=-1, keepdims=True)

        # ---- triplet: unit-sphere distance, running hardest pos / neg -------
        # both operands are L2-normalized => ||a-b||^2 = 2 - 2 a.b
        dist = jnp.sqrt(jnp.maximum(2.0 - 2.0 * g, 0.0))
        diag = row_ids == col_ids
        pos_maskf = jnp.where(diag, 0.0, maskf)
        hp_s[...] = jnp.maximum(
            hp_s[...], jnp.max(dist * pos_maskf, axis=-1, keepdims=True))
        neg_cand = jnp.where(col_valid, dist + maskf * 1000000.0, _POS_BIG)
        hn_s[...] = jnp.minimum(
            hn_s[...], jnp.min(neg_cand, axis=-1, keepdims=True))

        # ---- finalize on the last C tile ------------------------------------
        @pl.when(j == pl.num_programs(1) - 1)
        def _():
            lse = m_s[...] + jnp.log(l_s[...])
            # sum(mask*log_prob)/sum(mask) = sum(mask*sim)/sum(mask) - lse
            mean_log_prob_pos = snum_s[...] / msum_s[...] - lse
            sup_row = -mean_log_prob_pos
            trip_row = jnp.maximum(hp_s[...] - hn_s[...] + margin, 0.0)
            sup_out_ref[...] = jnp.where(row_valid, sup_row, 0.0)
            trip_out_ref[...] = jnp.where(row_valid, trip_row, 0.0)

    return kernel


def hybrid_loss(features, contrast_features, labels, contrast_labels,
                temperature=TEMPERATURE, margin=MARGIN,
                alpha=ALPHA, beta=BETA, tb_max=256, tc_max=512):
    B, D = features.shape
    C, Dc = contrast_features.shape
    assert D == Dc

    Dp = _round_up(D, 128)                       # full-lane feature axis
    TB = min(_round_up(B, 8), tb_max)
    Bp = _round_up(B, TB)
    TC = min(_round_up(C, 128), tc_max)
    Cp = _round_up(C, TC)

    # zero-pad (exact for L2-norm and dot); keep the model dtype (cast in-kernel)
    f_p = jnp.zeros((Bp, Dp), features.dtype).at[:B, :D].set(features)
    c_p = jnp.zeros((Cp, Dp), contrast_features.dtype).at[:C, :D].set(
        contrast_features)
    cT = c_p.T                                   # (Dp, Cp) lane-major RHS

    lab = jnp.zeros((Bp, 1), jnp.int32).at[:B, 0].set(labels.astype(jnp.int32))
    clab = jnp.zeros((1, Cp), jnp.int32).at[0, :C].set(
        contrast_labels.astype(jnp.int32))

    kernel = _make_kernel(B, C, TB, TC, temperature, margin)

    sup_rows, trip_rows = pl.pallas_call(
        kernel,
        out_shape=(jax.ShapeDtypeStruct((Bp, 1), jnp.float32),
                   jax.ShapeDtypeStruct((Bp, 1), jnp.float32)),
        grid_spec=pltpu.PrefetchScalarGridSpec(
            num_scalar_prefetch=0,
            grid=(Bp // TB, Cp // TC),
            in_specs=[
                pl.BlockSpec((TB, Dp), lambda i, j: (i, 0)),   # features
                pl.BlockSpec((Dp, TC), lambda i, j: (0, j)),   # contrast^T
                pl.BlockSpec((TB, 1), lambda i, j: (i, 0)),    # labels
                pl.BlockSpec((1, TC), lambda i, j: (0, j)),    # contrast labels
            ],
            out_specs=[
                pl.BlockSpec((TB, 1), lambda i, j: (i, 0)),
                pl.BlockSpec((TB, 1), lambda i, j: (i, 0)),
            ],
            scratch_shapes=[
                pltpu.VMEM((TB, Dp), jnp.float32),   # normalized feature tile
                pltpu.VMEM((TB, 1), jnp.float32),    # running row max
                pltpu.VMEM((TB, 1), jnp.float32),    # running sum-exp
                pltpu.VMEM((TB, 1), jnp.float32),    # sum(mask * sim)
                pltpu.VMEM((TB, 1), jnp.float32),    # sum(mask)
                pltpu.VMEM((TB, 1), jnp.float32),    # hardest positive
                pltpu.VMEM((TB, 1), jnp.float32),    # hardest negative
            ],
        ),
        compiler_params=pltpu.CompilerParams(
            dimension_semantics=("parallel", "arbitrary"),
            vmem_limit_bytes=64 * 1024 * 1024,
        ),
    )(f_p, cT, lab, clab)

    supcon = jnp.sum(sup_rows) / B
    triplet = jnp.sum(trip_rows) / B
    return alpha * supcon + beta * triplet


def reference_loss(features, contrast_features, labels, contrast_labels):
    """Pure-JAX reference mirroring the PyTorch module."""
    features = features.astype(jnp.float32)
    contrast_features = contrast_features.astype(jnp.float32)
    fn = features / jnp.maximum(
        jnp.linalg.norm(features, axis=1, keepdims=True), 1e-12)
    cn = contrast_features / jnp.maximum(
        jnp.linalg.norm(contrast_features, axis=1, keepdims=True), 1e-12)
    mask = (labels[:, None] == contrast_labels[None, :]).astype(jnp.float32)

    sim = (fn @ cn.T) / TEMPERATURE
    logits = sim - jnp.max(sim, axis=1, keepdims=True)
    log_prob = logits - jnp.log(jnp.sum(jnp.exp(logits), axis=1, keepdims=True))
    supcon = -jnp.mean(jnp.sum(mask * log_prob, axis=1) / jnp.sum(mask, axis=1))

    dist = jnp.sqrt(jnp.maximum(
        jnp.sum(fn * fn, 1)[:, None] + jnp.sum(cn * cn, 1)[None, :]
        - 2.0 * fn @ cn.T, 0.0))
    B, C = mask.shape
    pos_mask = mask * (1.0 - jnp.eye(B, C, dtype=jnp.float32))
    hp = jnp.max(dist * pos_mask, axis=1)
    hn = jnp.min(dist + mask * 1000000.0, axis=1)
    triplet = jnp.mean(jnp.maximum(hp - hn + MARGIN, 0.0))
    return ALPHA * supcon + BETA * triplet


if __name__ == "__main__":
    key = jax.random.PRNGKey(0)
    k1, k2, k3, k4, k5, k6 = jax.random.split(key, 6)

    # --- small demo consistent with the module (batch=8, feature_dim=32) ----
    B, D = 8, 32
    features = jax.random.normal(k1, (B, D), dtype=jnp.float32)
    contrast_features = jax.random.normal(k2, (B, D), dtype=jnp.float32)
    labels = jnp.array([0, 0, 1, 1, 2, 2, 3, 3], dtype=jnp.int32)
    contrast_labels = labels

    loss = hybrid_loss(features, contrast_features, labels, contrast_labels)
    loss = jax.block_until_ready(loss)
    ref = reference_loss(features, contrast_features, labels, contrast_labels)
    assert jnp.allclose(loss, ref, rtol=1e-4, atol=1e-4), (loss, ref)

    # --- second check exercising the tiled path (multi B/C tiles + padding) --
    B2, C2, D2 = 40, 300, 48
    f2 = jax.random.normal(k3, (B2, D2), dtype=jnp.float32)
    c2 = jax.random.normal(k4, (C2, D2), dtype=jnp.float32)
    l2 = jax.random.randint(k5, (B2,), 0, 5).astype(jnp.int32)
    cl2 = jax.random.randint(k6, (C2,), 0, 5).astype(jnp.int32)

    loss2 = hybrid_loss(f2, c2, l2, cl2, tb_max=16, tc_max=128)
    loss2 = jax.block_until_ready(loss2)
    ref2 = reference_loss(f2, c2, l2, cl2)
    assert jnp.allclose(loss2, ref2, rtol=2e-4, atol=2e-4), (loss2, ref2)

    print("KERNEL_OK")
</pallas_src>

<mosaic_0001>
module attributes {stable_mosaic.version = 11 : i64} {
  func.func @kernel(%arg0: i32, %arg1: i32, %arg2: memref<8x128xf32, #tpu.memory_space<vmem>>, %arg3: memref<128x128xf32, #tpu.memory_space<vmem>>, %arg4: memref<8x1xi32, #tpu.memory_space<vmem>>, %arg5: memref<1x128xi32, #tpu.memory_space<vmem>>, %arg6: memref<8x1xf32, #tpu.memory_space<vmem>>, %arg7: memref<8x1xf32, #tpu.memory_space<vmem>>, %arg8: memref<8x128xf32, #tpu.memory_space<vmem>>, %arg9: memref<8x1xf32, #tpu.memory_space<vmem>>, %arg10: memref<8x1xf32, #tpu.memory_space<vmem>>, %arg11: memref<8x1xf32, #tpu.memory_space<vmem>>, %arg12: memref<8x1xf32, #tpu.memory_space<vmem>>, %arg13: memref<8x1xf32, #tpu.memory_space<vmem>>, %arg14: memref<8x1xf32, #tpu.memory_space<vmem>>) attributes {dimension_semantics = [#tpu.dimension_semantics<parallel>, #tpu.dimension_semantics<arbitrary>], iteration_bounds = array<i64: 1, 1>, scalar_prefetch = 0 : i64, scratch_operands = 7 : i64, tpu.core_type = #tpu.core_type<tc>, window_params = [{transform_indices = @transform_0, window_bounds = array<i64: 8, 128>}, {transform_indices = @transform_1, window_bounds = array<i64: 128, 128>}, {transform_indices = @transform_2, window_bounds = array<i64: 8, 1>}, {transform_indices = @transform_3, window_bounds = array<i64: 1, 128>}, {transform_indices = @transform_4, window_bounds = array<i64: 8, 1>}, {transform_indices = @transform_5, window_bounds = array<i64: 8, 1>}]} {
    %c0_i32 = arith.constant 0 : i32
    %0 = arith.cmpi eq, %arg1, %c0_i32 : i32
    %1 = arith.extui %0 : i1 to i32
    %c0_i32_0 = arith.constant 0 : i32
    %2 = arith.cmpi ne, %1, %c0_i32_0 : i32
    scf.if %2 {
      %c0_54 = arith.constant 0 : index
      %c0_55 = arith.constant 0 : index
      %102 = vector.load %arg2[%c0_54, %c0_55] : memref<8x128xf32, #tpu.memory_space<vmem>>, vector<8x128xf32>
      %103 = arith.mulf %102, %102 : vector<8x128xf32>
      %cst_56 = arith.constant dense<0.000000e+00> : vector<8xf32>
      %104 = vector.multi_reduction <add>, %103, %cst_56 [1] : vector<8x128xf32> to vector<8xf32>
      %105 = vector.shape_cast %104 : vector<8xf32> to vector<8x1xf32>
      %106 = math.sqrt %105 : vector<8x1xf32>
      %cst_57 = arith.constant 9.99999996E-13 : f32
      %107 = vector.broadcast %cst_57 : f32 to vector<8x1xf32>
      %108 = arith.maximumf %106, %107 : vector<8x1xf32>
      %109 = vector.broadcast %108 : vector<8x1xf32> to vector<8x128xf32>
      %110 = arith.divf %102, %109 : vector<8x128xf32>
      %c0_58 = arith.constant 0 : index
      %c0_59 = arith.constant 0 : index
      %111 = vector.load %arg8[%c0_58, %c0_59] : memref<8x128xf32, #tpu.memory_space<vmem>>, vector<8x128xf32>
      tpu.vector_store %arg8[%c0_58, %c0_59], %110 {strides = array<i32>} : memref<8x128xf32, #tpu.memory_space<vmem>>, vector<8x128xf32>,
      %cst_60 = arith.constant -1.000000e+30 : f32
      %112 = vector.broadcast %cst_60 : f32 to vector<8x1xf32>
      %c0_61 = arith.constant 0 : index
      %c0_62 = arith.constant 0 : index
      %113 = vector.load %arg9[%c0_61, %c0_62] : memref<8x1xf32, #tpu.memory_space<vmem>>, vector<8x1xf32>
      tpu.vector_store %arg9[%c0_61, %c0_62], %112 {strides = array<i32>} : memref<8x1xf32, #tpu.memory_space<vmem>>, vector<8x1xf32>,
      %cst_63 = arith.constant 0.000000e+00 : f32
      %114 = vector.broadcast %cst_63 : f32 to vector<8x1xf32>
      %c0_64 = arith.constant 0 : index
      %c0_65 = arith.constant 0 : index
      %115 = vector.load %arg10[%c0_64, %c0_65] : memref<8x1xf32, #tpu.memory_space<vmem>>, vector<8x1xf32>
      tpu.vector_store %arg10[%c0_64, %c0_65], %114 {strides = array<i32>} : memref<8x1xf32, #tpu.memory_space<vmem>>, vector<8x1xf32>,
      %cst_66 = arith.constant 0.000000e+00 : f32
      %116 = vector.broadcast %cst_66 : f32 to vector<8x1xf32>
      %c0_67 = arith.constant 0 : index
      %c0_68 = arith.constant 0 : index
      %117 = vector.load %arg11[%c0_67, %c0_68] : memref<8x1xf32, #tpu.memory_space<vmem>>, vector<8x1xf32>
      tpu.vector_store %arg11[%c0_67, %c0_68], %116 {strides = array<i32>} : memref<8x1xf32, #tpu.memory_space<vmem>>, vector<8x1xf32>,
      %cst_69 = arith.constant 0.000000e+00 : f32
      %118 = vector.broadcast %cst_69 : f32 to vector<8x1xf32>
      %c0_70 = arith.constant 0 : index
      %c0_71 = arith.constant 0 : index
      %119 = vector.load %arg12[%c0_70, %c0_71] : memref<8x1xf32, #tpu.memory_space<vmem>>, vector<8x1xf32>
      tpu.vector_store %arg12[%c0_70, %c0_71], %118 {strides = array<i32>} : memref<8x1xf32, #tpu.memory_space<vmem>>, vector<8x1xf32>,
      %cst_72 = arith.constant 0.000000e+00 : f32
      %120 = vector.broadcast %cst_72 : f32 to vector<8x1xf32>
      %c0_73 = arith.constant 0 : index
      %c0_74 = arith.constant 0 : index
      %121 = vector.load %arg13[%c0_73, %c0_74] : memref<8x1xf32, #tpu.memory_space<vmem>>, vector<8x1xf32>
      tpu.vector_store %arg13[%c0_73, %c0_74], %120 {strides = array<i32>} : memref<8x1xf32, #tpu.memory_space<vmem>>, vector<8x1xf32>,
      %cst_75 = arith.constant 1.000000e+30 : f32
      %122 = vector.broadcast %cst_75 : f32 to vector<8x1xf32>
      %c0_76 = arith.constant 0 : index
      %c0_77 = arith.constant 0 : index
      %123 = vector.load %arg14[%c0_76, %c0_77] : memref<8x1xf32, #tpu.memory_space<vmem>>, vector<8x1xf32>
      tpu.vector_store %arg14[%c0_76, %c0_77], %122 {strides = array<i32>} : memref<8x1xf32, #tpu.memory_space<vmem>>, vector<8x1xf32>,
    } else {
    }
    %c0 = arith.constant 0 : index
    %c0_1 = arith.constant 0 : index
    %3 = vector.load %arg3[%c0, %c0_1] : memref<128x128xf32, #tpu.memory_space<vmem>>, vector<128x128xf32>
    %4 = arith.mulf %3, %3 : vector<128x128xf32>
    %cst = arith.constant dense<0.000000e+00> : vector<128xf32>
    %5 = vector.multi_reduction <add>, %4, %cst [0] : vector<128x128xf32> to vector<128xf32>
    %6 = vector.shape_cast %5 : vector<128xf32> to vector<1x128xf32>
    %7 = math.sqrt %6 : vector<1x128xf32>
    %cst_2 = arith.constant 9.99999996E-13 : f32
    %8 = vector.broadcast %cst_2 : f32 to vector<1x128xf32>
    %9 = arith.maximumf %7, %8 : vector<1x128xf32>
    %10 = vector.broadcast %9 : vector<1x128xf32> to vector<128x128xf32>
    %11 = arith.divf %3, %10 : vector<128x128xf32>
    %c0_3 = arith.constant 0 : index
    %c0_4 = arith.constant 0 : index
    %12 = vector.load %arg8[%c0_3, %c0_4] : memref<8x128xf32, #tpu.memory_space<vmem>>, vector<8x128xf32>
    %cst_5 = arith.constant dense<0.000000e+00> : vector<8x128xf32>
    %13 = tpu.matmul %12, %11, %cst_5 {dimension_numbers = #tpu.dot_dimension_numbers<[1], [0], [0], [1], [0, 0, 1, 1], [], []>} : vector<8x128xf32>, vector<128x128xf32>, vector<8x128xf32> -> vector<8x128xf32>
    %c0_6 = arith.constant 0 : index
    %c0_7 = arith.constant 0 : index
    %14 = vector.load %arg4[%c0_6, %c0_7] : memref<8x1xi32, #tpu.memory_space<vmem>>, vector<8x1xi32>
    %c0_8 = arith.constant 0 : index
    %c0_9 = arith.constant 0 : index
    %15 = vector.load %arg5[%c0_8, %c0_9] : memref<1x128xi32, #tpu.memory_space<vmem>>, vector<1x128xi32>
    %16 = tpu.iota {dimensions = array<i32: 0>} : vector<8x1xi32>
    %c8_i32 = arith.constant 8 : i32
    %17 = arith.muli %arg0, %c8_i32 : i32
    %18 = vector.broadcast %17 : i32 to vector<8x1xi32>
    %19 = arith.addi %16, %18 : vector<8x1xi32>
    %20 = tpu.iota {dimensions = array<i32: 1>} : vector<1x128xi32>
    %c128_i32 = arith.constant 128 : i32
    %21 = arith.muli %arg1, %c128_i32 : i32
    %22 = vector.broadcast %21 : i32 to vector<1x128xi32>
    %23 = arith.addi %20, %22 : vector<1x128xi32>
    %c8_i32_10 = arith.constant 8 : i32
    %24 = vector.broadcast %c8_i32_10 : i32 to vector<8x1xi32>
    %25 = arith.cmpi slt, %19, %24 : vector<8x1xi32>
    %c8_i32_11 = arith.constant 8 : i32
    %26 = vector.broadcast %c8_i32_11 : i32 to vector<1x128xi32>
    %27 = arith.cmpi slt, %23, %26 : vector<1x128xi32>
    %28 = vector.broadcast %14 : vector<8x1xi32> to vector<8x128xi32>
    %29 = vector.broadcast %15 : vector<1x128xi32> to vector<8x128xi32>
    %30 = arith.cmpi eq, %28, %29 : vector<8x128xi32>
    %31 = vector.broadcast %27 : vector<1x128xi1> to vector<8x128xi1>
    %32 = arith.andi %30, %31 : vector<8x128xi1>
    %cst_12 = arith.constant 1.000000e+00 : f32
    %cst_13 = arith.constant 0.000000e+00 : f32
    %33 = vector.broadcast %cst_12 : f32 to vector<8x128xf32>
    %34 = vector.broadcast %cst_13 : f32 to vector<8x128xf32>
    %35 = arith.select %32, %33, %34 : vector<8x128xi1>, vector<8x128xf32>
    %cst_14 = arith.constant 14.2857141 : f32
    %36 = vector.broadcast %cst_14 : f32 to vector<8x128xf32>
    %37 = arith.mulf %13, %36 : vector<8x128xf32>
    %cst_15 = arith.constant -1.000000e+30 : f32
    %38 = vector.shape_cast %27 : vector<1x128xi1> to vector<1x128xi1>
    %39 = vector.broadcast %38 : vector<1x128xi1> to vector<8x128xi1>
    %40 = vector.broadcast %cst_15 : f32 to vector<8x128xf32>
    %41 = arith.select %39, %37, %40 : vector<8x128xi1>, vector<8x128xf32>
    %c0_16 = arith.constant 0 : index
    %c0_17 = arith.constant 0 : index
    %42 = vector.load %arg9[%c0_16, %c0_17] : memref<8x1xf32, #tpu.memory_space<vmem>>, vector<8x1xf32>
    %cst_18 = arith.constant dense<0xFF800000> : vector<8xf32>
    %43 = vector.multi_reduction <maximumf>, %41, %cst_18 [1] : vector<8x128xf32> to vector<8xf32>
    %44 = vector.shape_cast %43 : vector<8xf32> to vector<8x1xf32>
    %45 = arith.maximumf %42, %44 : vector<8x1xf32>
    %46 = vector.broadcast %45 : vector<8x1xf32> to vector<8x128xf32>
    %47 = arith.subf %41, %46 : vector<8x128xf32>
    %48 = math.exp %47 : vector<8x128xf32>
    %49 = arith.subf %42, %45 : vector<8x1xf32>
    %50 = math.exp %49 : vector<8x1xf32>
    %c0_19 = arith.constant 0 : index
    %c0_20 = arith.constant 0 : index
    %51 = vector.load %arg10[%c0_19, %c0_20] : memref<8x1xf32, #tpu.memory_space<vmem>>, vector<8x1xf32>
    %52 = arith.mulf %51, %50 : vector<8x1xf32>
    %cst_21 = arith.constant dense<0.000000e+00> : vector<8xf32>
    %53 = vector.multi_reduction <add>, %48, %cst_21 [1] : vector<8x128xf32> to vector<8xf32>
    %54 = vector.shape_cast %53 : vector<8xf32> to vector<8x1xf32>
    %55 = arith.addf %52, %54 : vector<8x1xf32>
    %c0_22 = arith.constant 0 : index
    %c0_23 = arith.constant 0 : index
    %56 = vector.load %arg10[%c0_22, %c0_23] : memref<8x1xf32, #tpu.memory_space<vmem>>, vector<8x1xf32>
    tpu.vector_store %arg10[%c0_22, %c0_23], %55 {strides = array<i32>} : memref<8x1xf32, #tpu.memory_space<vmem>>, vector<8x1xf32>,
    %c0_24 = arith.constant 0 : index
    %c0_25 = arith.constant 0 : index
    %57 = vector.load %arg9[%c0_24, %c0_25] : memref<8x1xf32, #tpu.memory_space<vmem>>, vector<8x1xf32>
    tpu.vector_store %arg9[%c0_24, %c0_25], %45 {strides = array<i32>} : memref<8x1xf32, #tpu.memory_space<vmem>>, vector<8x1xf32>,
    %c0_26 = arith.constant 0 : index
    %c0_27 = arith.constant 0 : index
    %58 = vector.load %arg11[%c0_26, %c0_27] : memref<8x1xf32, #tpu.memory_space<vmem>>, vector<8x1xf32>
    %59 = arith.mulf %35, %37 : vector<8x128xf32>
    %cst_28 = arith.constant dense<0.000000e+00> : vector<8xf32>
    %60 = vector.multi_reduction <add>, %59, %cst_28 [1] : vector<8x128xf32> to vector<8xf32>
    %61 = vector.shape_cast %60 : vector<8xf32> to vector<8x1xf32>
    %62 = arith.addf %58, %61 : vector<8x1xf32>
    %c0_29 = arith.constant 0 : index
    %c0_30 = arith.constant 0 : index
    %63 = vector.load %arg11[%c0_29, %c0_30] : memref<8x1xf32, #tpu.memory_space<vmem>>, vector<8x1xf32>
    tpu.vector_store %arg11[%c0_29, %c0_30], %62 {strides = array<i32>} : memref<8x1xf32, #tpu.memory_space<vmem>>, vector<8x1xf32>,
    %c0_31 = arith.constant 0 : index
    %c0_32 = arith.constant 0 : index
    %64 = vector.load %arg12[%c0_31, %c0_32] : memref<8x1xf32, #tpu.memory_space<vmem>>, vector<8x1xf32>
    %cst_33 = arith.constant dense<0.000000e+00> : vector<8xf32>
    %65 = vector.multi_reduction <add>, %35, %cst_33 [1] : vector<8x128xf32> to vector<8xf32>
    %66 = vector.shape_cast %65 : vector<8xf32> to vector<8x1xf32>
    %67 = arith.addf %64, %66 : vector<8x1xf32>
    %c0_34 = arith.constant 0 : index
    %c0_35 = arith.constant 0 : index
    %68 = vector.load %arg12[%c0_34, %c0_35] : memref<8x1xf32, #tpu.memory_space<vmem>>, vector<8x1xf32>
    tpu.vector_store %arg12[%c0_34, %c0_35], %67 {strides = array<i32>} : memref<8x1xf32, #tpu.memory_space<vmem>>, vector<8x1xf32>,
    %cst_36 = arith.constant 2.000000e+00 : f32
    %69 = vector.broadcast %cst_36 : f32 to vector<8x128xf32>
    %70 = arith.mulf %69, %13 : vector<8x128xf32>
    %cst_37 = arith.constant 2.000000e+00 : f32
    %71 = vector.broadcast %cst_37 : f32 to vector<8x128xf32>
    %72 = arith.subf %71, %70 : vector<8x128xf32>
    %cst_38 = arith.constant 0.000000e+00 : f32
    %73 = vector.broadcast %cst_38 : f32 to vector<8x128xf32>
    %74 = arith.maximumf %72, %73 : vector<8x128xf32>
    %75 = math.sqrt %74 : vector<8x128xf32>
    %76 = vector.broadcast %19 : vector<8x1xi32> to vector<8x128xi32>
    %77 = vector.broadcast %23 : vector<1x128xi32> to vector<8x128xi32>
    %78 = arith.cmpi eq, %76, %77 : vector<8x128xi32>
    %cst_39 = arith.constant 0.000000e+00 : f32
    %79 = vector.broadcast %cst_39 : f32 to vector<8x128xf32>
    %80 = arith.select %78, %79, %35 : vector<8x128xi1>, vector<8x128xf32>
    %c0_40 = arith.constant 0 : index
    %c0_41 = arith.constant 0 : index
    %81 = vector.load %arg13[%c0_40, %c0_41] : memref<8x1xf32, #tpu.memory_space<vmem>>, vector<8x1xf32>
    %82 = arith.mulf %75, %80 : vector<8x128xf32>
    %cst_42 = arith.constant dense<0xFF800000> : vector<8xf32>
    %83 = vector.multi_reduction <maximumf>, %82, %cst_42 [1] : vector<8x128xf32> to vector<8xf32>
    %84 = vector.shape_cast %83 : vector<8xf32> to vector<8x1xf32>
    %85 = arith.maximumf %81, %84 : vector<8x1xf32>
    %c0_43 = arith.constant 0 : index
    %c0_44 = arith.constant 0 : index
    %86 = vector.load %arg13[%c0_43, %c0_44] : memref<8x1xf32, #tpu.memory_space<vmem>>, vector<8x1xf32>
    tpu.vector_store %arg13[%c0_43, %c0_44], %85 {strides = array<i32>} : memref<8x1xf32, #tpu.memory_space<vmem>>, vector<8x1xf32>,
    %cst_45 = arith.constant 1.000000e+06 : f32
    %87 = vector.broadcast %cst_45 : f32 to vector<8x128xf32>
    %88 = arith.mulf %35, %87 : vector<8x128xf32>
    %89 = arith.addf %75, %88 : vector<8x128xf32>
    %cst_46 = arith.constant 1.000000e+30 : f32
    %90 = vector.shape_cast %27 : vector<1x128xi1> to vector<1x128xi1>
    %91 = vector.broadcast %90 : vector<1x128xi1> to vector<8x128xi1>
    %92 = vector.broadcast %cst_46 : f32 to vector<8x128xf32>
    %93 = arith.select %91, %89, %92 : vector<8x128xi1>, vector<8x128xf32>
    %c0_47 = arith.constant 0 : index
    %c0_48 = arith.constant 0 : index
    %94 = vector.load %arg14[%c0_47, %c0_48] : memref<8x1xf32, #tpu.memory_space<vmem>>, vector<8x1xf32>
    %cst_49 = arith.constant dense<0x7F800000> : vector<8xf32>
    %95 = vector.multi_reduction <minimumf>, %93, %cst_49 [1] : vector<8x128xf32> to vector<8xf32>
    %96 = vector.shape_cast %95 : vector<8xf32> to vector<8x1xf32>
    %97 = arith.minimumf %94, %96 : vector<8x1xf32>
    %c0_50 = arith.constant 0 : index
    %c0_51 = arith.constant 0 : index
    %98 = vector.load %arg14[%c0_50, %c0_51] : memref<8x1xf32, #tpu.memory_space<vmem>>, vector<8x1xf32>
    tpu.vector_store %arg14[%c0_50, %c0_51], %97 {strides = array<i32>} : memref<8x1xf32, #tpu.memory_space<vmem>>, vector<8x1xf32>,
    %c0_i32_52 = arith.constant 0 : i32
    %99 = arith.cmpi eq, %arg1, %c0_i32_52 : i32
    %100 = arith.extui %99 : i1 to i32
    %c0_i32_53 = arith.constant 0 : i32
    %101 = arith.cmpi ne, %100, %c0_i32_53 : i32
    scf.if %101 {
      %c0_54 = arith.constant 0 : index
      %c0_55 = arith.constant 0 : index
      %102 = vector.load %arg9[%c0_54, %c0_55] : memref<8x1xf32, #tpu.memory_space<vmem>>, vector<8x1xf32>
      %c0_56 = arith.constant 0 : index
      %c0_57 = arith.constant 0 : index
      %103 = vector.load %arg10[%c0_56, %c0_57] : memref<8x1xf32, #tpu.memory_space<vmem>>, vector<8x1xf32>
      %104 = math.log %103 : vector<8x1xf32>
      %105 = arith.addf %102, %104 : vector<8x1xf32>
      %c0_58 = arith.constant 0 : index
      %c0_59 = arith.constant 0 : index
      %106 = vector.load %arg11[%c0_58, %c0_59] : memref<8x1xf32, #tpu.memory_space<vmem>>, vector<8x1xf32>
      %c0_60 = arith.constant 0 : index
      %c0_61 = arith.constant 0 : index
      %107 = vector.load %arg12[%c0_60, %c0_61] : memref<8x1xf32, #tpu.memory_space<vmem>>, vector<8x1xf32>
      %108 = arith.divf %106, %107 : vector<8x1xf32>
      %109 = arith.subf %108, %105 : vector<8x1xf32>
      %cst_62 = arith.constant 0.000000e+00 : f32
      %110 = vector.broadcast %cst_62 : f32 to vector<8x1xf32>
      %111 = arith.subf %110, %109 : vector<8x1xf32>
      %c0_63 = arith.constant 0 : index
      %c0_64 = arith.constant 0 : index
      %112 = vector.load %arg13[%c0_63, %c0_64] : memref<8x1xf32, #tpu.memory_space<vmem>>, vector<8x1xf32>
      %c0_65 = arith.constant 0 : index
      %c0_66 = arith.constant 0 : index
      %113 = vector.load %arg14[%c0_65, %c0_66] : memref<8x1xf32, #tpu.memory_space<vmem>>, vector<8x1xf32>
      %114 = arith.subf %112, %113 : vector<8x1xf32>
      %cst_67 = arith.constant 1.000000e+00 : f32
      %115 = vector.broadcast %cst_67 : f32 to vector<8x1xf32>
      %116 = arith.addf %114, %115 : vector<8x1xf32>
      %cst_68 = arith.constant 0.000000e+00 : f32
      %117 = vector.broadcast %cst_68 : f32 to vector<8x1xf32>
      %118 = arith.maximumf %116, %117 : vector<8x1xf32>
      %cst_69 = arith.constant 0.000000e+00 : f32
      %119 = vector.broadcast %cst_69 : f32 to vector<8x1xf32>
      %120 = arith.select %25, %111, %119 : vector<8x1xi1>, vector<8x1xf32>
      %c0_70 = arith.constant 0 : index
      %c0_71 = arith.constant 0 : index
      %121 = vector.load %arg6[%c0_70, %c0_71] : memref<8x1xf32, #tpu.memory_space<vmem>>, vector<8x1xf32>
      tpu.vector_store %arg6[%c0_70, %c0_71], %120 {strides = array<i32>} : memref<8x1xf32, #tpu.memory_space<vmem>>, vector<8x1xf32>,
      %cst_72 = arith.constant 0.000000e+00 : f32
      %122 = vector.broadcast %cst_72 : f32 to vector<8x1xf32>
      %123 = arith.select %25, %118, %122 : vector<8x1xi1>, vector<8x1xf32>
      %c0_73 = arith.constant 0 : index
      %c0_74 = arith.constant 0 : index
      %124 = vector.load %arg7[%c0_73, %c0_74] : memref<8x1xf32, #tpu.memory_space<vmem>>, vector<8x1xf32>
      tpu.vector_store %arg7[%c0_73, %c0_74], %123 {strides = array<i32>} : memref<8x1xf32, #tpu.memory_space<vmem>>, vector<8x1xf32>,
    } else {
    }
    return
  }
  func.func @transform_0(%arg0: i32, %arg1: i32) -> (i32, i32) {
    %c0_i32 = arith.constant 0 : i32
    %c0_i32_0 = arith.constant 0 : i32
    return %arg0, %c0_i32 : i32, i32
  }
  func.func @transform_1(%arg0: i32, %arg1: i32) -> (i32, i32) {
    %c0_i32 = arith.constant 0 : i32
    %c0_i32_0 = arith.constant 0 : i32
    return %c0_i32, %arg1 : i32, i32
  }
  func.func @transform_2(%arg0: i32, %arg1: i32) -> (i32, i32) {
    %c0_i32 = arith.constant 0 : i32
    %c0_i32_0 = arith.constant 0 : i32
    return %arg0, %c0_i32 : i32, i32
  }
  func.func @transform_3(%arg0: i32, %arg1: i32) -> (i32, i32) {
    %c0_i32 = arith.constant 0 : i32
    %c0_i32_0 = arith.constant 0 : i32
    return %c0_i32, %arg1 : i32, i32
  }
  func.func @transform_4(%arg0: i32, %arg1: i32) -> (i32, i32) {
    %c0_i32 = arith.constant 0 : i32
    %c0_i32_0 = arith.constant 0 : i32
    return %arg0, %c0_i32 : i32, i32
  }
  func.func @transform_5(%arg0: i32, %arg1: i32) -> (i32, i32) {
    %c0_i32 = arith.constant 0 : i32
    %c0_i32_0 = arith.constant 0 : i32
    return %arg0, %c0_i32 : i32, i32
  }
}

</mosaic_0001>

<llo_original>
// kernel: tpu_custom_call.1
$region0: #{tpu_custom_call.1}
  #allocation0 [shape = 'u32[]', space=smem, size = 0x4, offset = 0x4, fixed_abs, tag = 'smem constant byte address 0x4 - core index']
  #allocation1 [shape = 'u32[144,128]{1,0:T(1,128)}', space=vmem, size = 0x12000, scoped, tag = 'internal scratch']
  #allocation2 [shape = 'f32[8,128]{1,0:T(8,128)}', space=vmem, size = 0x1000, scoped, tag = 'scratch operand']
  #allocation3 [shape = 'f32[8,1]{1,0:T(8,128)}', space=vmem, size = 0x1000, scoped, tag = 'scratch operand']
  #allocation4 [shape = 'f32[8,1]{1,0:T(8,128)}', space=vmem, size = 0x1000, scoped, tag = 'scratch operand']
  #allocation5 [shape = 'f32[8,1]{1,0:T(8,128)}', space=vmem, size = 0x1000, scoped, tag = 'scratch operand']
  #allocation6 [shape = 'f32[8,1]{1,0:T(8,128)}', space=vmem, size = 0x1000, scoped, tag = 'scratch operand']
  #allocation7 [shape = 'f32[8,1]{1,0:T(8,128)}', space=vmem, size = 0x1000, scoped, tag = 'scratch operand']
  #allocation8 [shape = 'f32[8,1]{1,0:T(8,128)}', space=vmem, size = 0x1000, scoped, tag = 'scratch operand']
  %s0 = inlined_call_operand.vmem [shape: f32[8,128], index: 0, kind: input, shape index: {}]
  %s1 = inlined_call_operand.hbm [shape: f32[128,128], index: 1, kind: input, shape index: {}]
  %s2 = inlined_call_operand.vmem [shape: s32[8,1], index: 2, kind: input, shape index: {}]
  %s3 = inlined_call_operand.vmem [shape: s32[1,128], index: 3, kind: input, shape index: {}]
  %s4 = inlined_call_operand.vmem [shape: f32[8,1], index: 4, kind: output, shape index: {0}]
  %s5 = inlined_call_operand.vmem [shape: f32[8,1], index: 5, kind: output, shape index: {1}]
  %6 = xla_tuple %s4, %s5
  %s7 = sld [smem:[#allocation0]]
  $region46: #{tpu_custom_call.1} parent=0
    _
  %s9 = ssub.s32 1, %s7
  %s10 = scalar_select 0, %s9, %s7
  $region1: #{tpu_custom_call.1} parent=0
    #allocation9 [shape = 'u8[65536]{0}', space=vmem, size = 0x10000, scoped, tag = 'input window, operand 1, single buffered']
    #allocation10 [shape = 's32[1]{0}', space=sflag, size = 0x4, scoped, tag = 'scoped memory for tpu_custom_call.1']
    %11 = vsyncpa [#allocation10], 0
    // Predicated region
    $region2: #{tpu_custom_call.1} parent=1 // pred_check
      _
    $region3: #{tpu_custom_call.1} parent=1 // pred_check_branch
      %13 = sbr.rel (0) target = $region5
    $region4: #{tpu_custom_call.1} parent=1 // pred_region
      _
    $region5: #{tpu_custom_call.1} parent=1 // pred_fallthru
      _
    // Predicated region
    $region6: #{tpu_custom_call.1} parent=1 // pred_check
      _
    $region7: #{tpu_custom_call.1} parent=1 // pred_check_branch
      %15 = sbr.rel (0) target = $region9
    $region8: #{tpu_custom_call.1} parent=1 // pred_region
      %s17 = ssub.s32 2048, 2048
      %18 = vsyncadd [#allocation10], %s17
      %s19 = sshll.u32 [#allocation9], 4
      %s20 = int_to_ptr.vmem [resolvable:$true] %s19
      %25 = dma.hbm_to_vmem [thread:$0]  %s1, 2048, %s20, [#allocation10], 128, 128, 8
    $region9: #{tpu_custom_call.1} parent=1 // pred_fallthru
      _
    // Predicated region
    $region10: #{tpu_custom_call.1} parent=1 // pred_check
      _
    $region11: #{tpu_custom_call.1} parent=1 // pred_check_branch
      %27 = sbr.rel (0) target = $region13
    $region12: #{tpu_custom_call.1} parent=1 // pred_region
      _
    $region13: #{tpu_custom_call.1} parent=1 // pred_fallthru
      _
    // Predicated region
    $region14: #{tpu_custom_call.1} parent=1 // pred_check
      _
    $region15: #{tpu_custom_call.1} parent=1 // pred_check_branch
      %29 = sbr.rel (0) target = $region17
    $region16: #{tpu_custom_call.1} parent=1 // pred_region
      _
    $region17: #{tpu_custom_call.1} parent=1 // pred_fallthru
      _
    // Predicated region
    $region18: #{tpu_custom_call.1} parent=1 // pred_check
      _
    $region19: #{tpu_custom_call.1} parent=1 // pred_check_branch
      %31 = sbr.rel (0) target = $region21
    $region20: #{tpu_custom_call.1} parent=1 // pred_region
      %32 = dma.done [#allocation10], 2048
    $region21: #{tpu_custom_call.1} parent=1 // pred_fallthru
      _
    %p33 = scmp.eq.s32.totalorder 0, 0
    // Predicated region
    $region22: #{tpu_custom_call.1} parent=1 // pred_check
      %p34 = pneg %p33
    $region23: #{tpu_custom_call.1} parent=1 // pred_check_branch
      %36 = sbr.rel (%p34) target = $region25
    $region24: #{tpu_custom_call.1} parent=1 // pred_region
      %v37 = vld [vmem:[%s0] sm:$0xff]
      %v38 = vmul.f32 %v37, %v37
      %39 = vadd.xlane.f32.xlu0 %v38
      %v40 = vpop.xlane.xlu0 %39
      %v41 = vrsqrt.pop %v40
      %v42 = vmul.f32 %v40, %v41
      %vm43 = vcmp.eq.f32.partialorder %v40, inf
      %v44 = vsel %vm43, %v40, %v42
      %vm45 = vcmp.eq.f32.partialorder %v40, 0.0
      %v46 = vand.u32 %v40, 2147483648
      %v47 = vsel %vm45, %v46, %v44
      %v48 = vmax.f32 %v47, 1e-12
      %v49 = vrcp.pop %v48
      %v50 = vmul.f32 %v37, %v49
      %51 = vst [vmem:[#allocation2] sm:$0xff] %v50
      %vm52 = vcmask 7168
      %53 = vst.msk [vmem:[#allocation3] sm:$0xff] %vm52, -1e+30
      %54 = vst.msk [vmem:[#allocation4] sm:$0xff] %vm52, 0.0
      %55 = vst.msk [vmem:[#allocation5] sm:$0xff] %vm52, 0.0
      %56 = vst.msk [vmem:[#allocation6] sm:$0xff] %vm52, 0.0
      %57 = vst.msk [vmem:[#allocation7] sm:$0xff] %vm52, 0.0
      %58 = vst.msk [vmem:[#allocation8] sm:$0xff] %vm52, 1e+30
    $region25: #{tpu_custom_call.1} parent=1 // pred_fallthru
      _
    %v59 = vld [vmem:[#allocation9] sm:$0xff]
    %v60 = vld [vmem:[#allocation9 + $0x8] sm:$0xff]
    %v61 = vld [vmem:[#allocation9 + $0x10] sm:$0xff]
    %v62 = vld [vmem:[#allocation9 + $0x18] sm:$0xff]
    %v63 = vld [vmem:[#allocation9 + $0x20] sm:$0xff]
    %v64 = vld [vmem:[#allocation9 + $0x28] sm:$0xff]
    %v65 = vld [vmem:[#allocation9 + $0x30] sm:$0xff]
    %v66 = vld [vmem:[#allocation9 + $0x38] sm:$0xff]
    %v67 = vld [vmem:[#allocation9 + $0x40] sm:$0xff]
    %v68 = vld [vmem:[#allocation9 + $0x48] sm:$0xff]
    %v69 = vld [vmem:[#allocation9 + $0x50] sm:$0xff]
    %v70 = vld [vmem:[#allocation9 + $0x58] sm:$0xff]
    %v71 = vld [vmem:[#allocation9 + $0x60] sm:$0xff]
    %v72 = vld [vmem:[#allocation9 + $0x68] sm:$0xff]
    %v73 = vld [vmem:[#allocation9 + $0x70] sm:$0xff]
    %v74 = vld [vmem:[#allocation9 + $0x78] sm:$0xff]
    %v75 = vmul.f32 %v59, %v59
    %v76 = vmul.f32 %v60, %v60
    %v77 = vmul.f32 %v61, %v61
    %v78 = vmul.f32 %v62, %v62
    %v79 = vmul.f32 %v63, %v63
    %v80 = vmul.f32 %v64, %v64
    %v81 = vmul.f32 %v65, %v65
    %v82 = vmul.f32 %v66, %v66
    %v83 = vmul.f32 %v67, %v67
    %v84 = vmul.f32 %v68, %v68
    %v85 = vmul.f32 %v69, %v69
    %v86 = vmul.f32 %v70, %v70
    %v87 = vmul.f32 %v71, %v71
    %v88 = vmul.f32 %v72, %v72
    %v89 = vmul.f32 %v73, %v73
    %v90 = vmul.f32 %v74, %v74
    %v91 = vadd.f32 %v75, %v76
    %v92 = vadd.f32 %v91, %v77
    %v93 = vadd.f32 %v92, %v78
    %v94 = vadd.f32 %v93, %v79
    %v95 = vadd.f32 %v94, %v80
    %v96 = vadd.f32 %v95, %v81
    %v97 = vadd.f32 %v96, %v82
    %v98 = vadd.f32 %v97, %v83
    %v99 = vadd.f32 %v98, %v84
    %v100 = vadd.f32 %v99, %v85
    %v101 = vadd.f32 %v100, %v86
    %v102 = vadd.f32 %v101, %v87
    %v103 = vadd.f32 %v102, %v88
    %v104 = vadd.f32 %v103, %v89
    %v105 = vadd.f32 %v104, %v90
    %v106 = vrot.slane %v105, 4
    %v107 = vadd.f32 %v105, %v106
    %v108 = vrot.slane %v107, 2
    %v109 = vadd.f32 %v107, %v108
    %v110 = vrot.slane %v109, 1
    %v111 = vadd.f32 %v109, %v110
    %v112 = vrsqrt.pop %v111
    %v113 = vmul.f32 %v111, %v112
    %vm114 = vcmp.eq.f32.partialorder %v111, inf
    %v115 = vsel %vm114, %v111, %v113
    %vm116 = vcmp.eq.f32.partialorder %v111, 0.0
    %v117 = vand.u32 %v111, 2147483648
    %v118 = vsel %vm116, %v117, %v115
    %v119 = vmax.f32 %v118, 1e-12
    %v120 = vrcp.pop %v119
    %v121 = vmul.f32 %v59, %v120
    %v122 = vmul.f32 %v60, %v120
    %v123 = vmul.f32 %v61, %v120
    %v124 = vmul.f32 %v62, %v120
    %v125 = vmul.f32 %v63, %v120
    %v126 = vmul.f32 %v64, %v120
    %v127 = vmul.f32 %v65, %v120
    %v128 = vmul.f32 %v66, %v120
    %v129 = vmul.f32 %v67, %v120
    %v130 = vmul.f32 %v68, %v120
    %v131 = vmul.f32 %v69, %v120
    %v132 = vmul.f32 %v70, %v120
    %v133 = vmul.f32 %v71, %v120
    %v134 = vmul.f32 %v72, %v120
    %v135 = vmul.f32 %v73, %v120
    %v136 = vmul.f32 %v74, %v120
    %v137 = vld [vmem:[#allocation2] sm:$0xff]
    %138 = vmatprep.subr.mxu0 0.0
    %139 = vmatpush1.msra.mxu0 %v136
    %140 = vmatprep.subr.mxu0 0.0
    %141 = vmatpush1.msra.mxu0 %v135
    %142 = vmatprep.subr.mxu0 0.0
    %143 = vmatpush1.msra.mxu0 %v134
    %144 = vmatprep.subr.mxu0 0.0
    %145 = vmatpush1.msra.mxu0 %v133
    %146 = vmatprep.subr.mxu0 0.0
    %147 = vmatpush1.msra.mxu0 %v132
    %148 = vmatprep.subr.mxu0 0.0
    %149 = vmatpush1.msra.mxu0 %v131
    %150 = vmatprep.subr.mxu0 0.0
    %151 = vmatpush1.msra.mxu0 %v130
    %152 = vmatprep.subr.mxu0 0.0
    %153 = vmatpush1.msra.mxu0 %v129
    %154 = vmatprep.subr.mxu0 0.0
    %155 = vmatpush1.msra.mxu0 %v128
    %156 = vmatprep.subr.mxu0 0.0
    %157 = vmatpush1.msra.mxu0 %v127
    %158 = vmatprep.subr.mxu0 0.0
    %159 = vmatpush1.msra.mxu0 %v126
    %160 = vmatprep.subr.mxu0 0.0
    %161 = vmatpush1.msra.mxu0 %v125
    %162 = vmatprep.subr.mxu0 0.0
    %163 = vmatpush1.msra.mxu0 %v124
    %164 = vmatprep.subr.mxu0 0.0
    %165 = vmatpush1.msra.mxu0 %v123
    %166 = vmatprep.subr.mxu0 0.0
    %167 = vmatpush1.msra.mxu0 %v122
    %168 = vmatprep.subr.mxu0 0.0
    %169 = vmatpush1.msra.mxu0 %v121
    %170 = vmatprep.subr.mxu0 0.0
    %171 = vmatpush2.msra.mxu0 0.0
    %172 = vmatprep.subr.mxu0 0.0
    %173 = vmatpush2.msra.mxu0 0.0
    %174 = vmatprep.subr.mxu0 0.0
    %175 = vmatpush2.msra.mxu0 0.0
    %176 = vmatprep.subr.mxu0 0.0
    %177 = vmatpush2.msra.mxu0 0.0
    %178 = vmatprep.subr.mxu0 0.0
    %179 = vmatpush2.msra.mxu0 0.0
    %180 = vmatprep.subr.mxu0 0.0
    %181 = vmatpush2.msra.mxu0 0.0
    %182 = vmatprep.subr.mxu0 0.0
    %183 = vmatpush2.msra.mxu0 0.0
    %184 = vmatprep.subr.mxu0 0.0
    %185 = vmatpush2.msra.mxu0 0.0
    %186 = vmatprep.subr.mxu0 0.0
    %187 = vmatpush2.msra.mxu0 0.0
    %188 = vmatprep.subr.mxu0 0.0
    %189 = vmatpush2.msra.mxu0 0.0
    %190 = vmatprep.subr.mxu0 0.0
    %191 = vmatpush2.msra.mxu0 0.0
    %192 = vmatprep.subr.mxu0 0.0
    %193 = vmatpush2.msra.mxu0 0.0
    %194 = vmatprep.subr.mxu0 0.0
    %195 = vmatpush2.msra.mxu0 0.0
    %196 = vmatprep.subr.mxu0 0.0
    %197 = vmatpush2.msra.mxu0 0.0
    %198 = vmatprep.subr.mxu0 0.0
    %199 = vmatpush2.msra.mxu0 0.0
    %200 = vmatprep.subr.mxu0 0.0
    %201 = vmatpush2.msra.mxu0 0.0
    %202 = vmatprep.mubr.f32.mxu0 0.0
    %203 = vmatmul.mubr.f32.gmra.mxu0 %v137
    %v204 = vpop.f32.mrf.mxu0
    %v205 = vadd.f32 0.0, %v204
    %v206 = vpop.f32.mrf.mxu0
    %207 = vdwg.mxu0
    %v208 = vld [vmem:[%s2] sm:$0xff]
    %v209 = vld [vmem:[%s3] sm:$0x1]
    %v210 = vlaneseq
    %v211 = vshrl.u32 %v210, 7
    %s212 = smul.u32 0, 8
    %v213 = vstv %s212
    %v214 = vadd.s32 %v211, %v213
    %v215 = vlaneseq
    %v216 = vand.u32 %v215, 127
    %s217 = smul.u32 0, 128
    %v218 = vstv %s217
    %v219 = vadd.s32 %v216, %v218
    %vm220 = vcmp.lt.s32.totalorder %v214, 8
    %vm221 = vcmp.lt.s32.totalorder %v219, 8
    %222 = vset.pattern.permute.xlu0 0
    %223 = vperm.xlu0 %222, %v208
    %v224 = vpop.permute.xlu0 %223
    %v225 = vlaneseq
    %v226 = vshrl.u32 %v225, 7
    %v227 = vsub.s32 0, %v226
    %v228 = vrot.slane %v209, %v227
    %vm229 = vcmp.eq.s32.totalorder %v224, %v228
    %v230 = vsel %vm221, 1, 0
    %vm231 = vcmp.eq.s32.totalorder %v230, 1
    %vm232 = vmand %vm229, %vm231
    %v233 = vsel %vm232, 1.0, 0.0
    %v234 = vmul.f32 %v205, 14.285714
    %v235 = vsel %vm231, %v234, -1e+30
    %v236 = vld [vmem:[#allocation3] sm:$0xff]
    %237 = vmax.xlane.f32.xlu0 %v235
    %v238 = vpop.xlane.xlu0 %237
    %v239 = vmax.f32 %v236, %v238
    %241 = vset.pattern.permute.xlu0 0
    %242 = vperm.xlu0 %241, %v239
    %v243 = vpop.permute.xlu0 %242
    %v245 = vsub.f32 %v235, %v243
    %v246 = vmul.f32 %v245, 1.442695
    %v247 = vpow.pop %v246
    %v248 = vsub.f32 %v236, %v239
    %v249 = vmul.f32 %v248, 1.442695
    %v250 = vpow.pop %v249
    %v251 = vld [vmem:[#allocation4] sm:$0xff]
    %v252 = vmul.f32 %v251, %v250
    %253 = vadd.xlane.f32.xlu0 %v247
    %v254 = vpop.xlane.xlu0 %253
    %v255 = vadd.f32 %v252, %v254
    %vm256 = vcmask 7168
    %257 = vst.msk [vmem:[#allocation4] sm:$0xff] %vm256, %v255
    %258 = vst.msk [vmem:[#allocation3] sm:$0xff] %vm256, %v239
    %v259 = vld [vmem:[#allocation5] sm:$0xff]
    %v260 = vmul.f32 %v233, %v234
    %261 = vadd.xlane.f32.xlu0 %v260
    %v262 = vpop.xlane.xlu0 %261
    %v263 = vadd.f32 %v259, %v262
    %264 = vst.msk [vmem:[#allocation5] sm:$0xff] %vm256, %v263
    %v265 = vld [vmem:[#allocation6] sm:$0xff]
    %266 = vadd.xlane.f32.xlu0 %v233
    %v267 = vpop.xlane.xlu0 %266
    %v268 = vadd.f32 %v265, %v267
    %269 = vst.msk [vmem:[#allocation6] sm:$0xff] %vm256, %v268
    %v270 = vmul.f32 %v205, 2.0
    %v271 = vsub.f32 2.0, %v270
    %v272 = vmax.f32 %v271, 0.0
    %v273 = vrsqrt.pop %v272
    %v274 = vmul.f32 %v272, %v273
    %vm275 = vcmp.eq.f32.partialorder %v272, inf
    %v276 = vsel %vm275, %v272, %v274
    %vm277 = vcmp.eq.f32.partialorder %v272, 0.0
    %v278 = vand.u32 %v272, 2147483648
    %v279 = vsel %vm277, %v278, %v276
    %vm280 = vcmp.eq.s32.totalorder %v214, %v219
    %v281 = vsel %vm280, 0.0, %v233
    %v282 = vld [vmem:[#allocation7] sm:$0xff]
    %v283 = vmul.f32 %v279, %v281
    %284 = vmax.xlane.f32.xlu0 %v283
    %v285 = vpop.xlane.xlu0 %284
    %v286 = vmax.f32 %v282, %v285
    %287 = vst.msk [vmem:[#allocation7] sm:$0xff] %vm256, %v286
    %v288 = vmul.f32 %v233, 1000000.0
    %v289 = vadd.f32 %v279, %v288
    %v290 = vsel %vm231, %v289, 1e+30
    %v291 = vld [vmem:[#allocation8] sm:$0xff]
    %292 = vmin.xlane.f32.xlu0 %v290
    %v293 = vpop.xlane.xlu0 %292
    %v294 = vmin.f32 %v291, %v293
    %295 = vst.msk [vmem:[#allocation8] sm:$0xff] %vm256, %v294
    // Predicated region
    $region26: #{tpu_custom_call.1} parent=1 // pred_check
      %p296 = pneg %p33
    $region27: #{tpu_custom_call.1} parent=1 // pred_check_branch
      %298 = sbr.rel (%p296) target = $region29
    $region28: #{tpu_custom_call.1} parent=1 // pred_region
      %v299 = vld [vmem:[#allocation3] sm:$0xff]
      %v300 = vld [vmem:[#allocation4] sm:$0xff]
      %v301 = vlog2.pop %v300
      %v302 = vmul.f32 %v301, 0.6931472
      %v303 = vadd.f32 %v299, %v302
      %v304 = vld [vmem:[#allocation5] sm:$0xff]
      %v305 = vld [vmem:[#allocation6] sm:$0xff]
      %v306 = vrcp.pop %v305
      %v307 = vmul.f32 %v304, %v306
      %v308 = vsub.f32 %v307, %v303
      %v309 = vsub.f32 0.0, %v308
      %v310 = vld [vmem:[#allocation7] sm:$0xff]
      %v311 = vld [vmem:[#allocation8] sm:$0xff]
      %v312 = vsub.f32 %v310, %v311
      %v313 = vadd.f32 %v312, 1.0
      %v314 = vmax.f32 %v313, 0.0
      %v315 = vsel %vm220, %v309, 0.0
      %316 = vst.msk [vmem:[%s4] sm:$0xff] %vm256, %v315
      %v317 = vsel %vm220, %v314, 0.0
      %318 = vst.msk [vmem:[%s5] sm:$0xff] %vm256, %v317
    $region29: #{tpu_custom_call.1} parent=1 // pred_fallthru
      _
    // Predicated region
    $region30: #{tpu_custom_call.1} parent=1 // pred_check
      _
    $region31: #{tpu_custom_call.1} parent=1 // pred_check_branch
      %320 = sbr.rel (0) target = $region33
    $region32: #{tpu_custom_call.1} parent=1 // pred_region
      _
    $region33: #{tpu_custom_call.1} parent=1 // pred_fallthru
      _
    // Predicated region
    $region34: #{tpu_custom_call.1} parent=1 // pred_check
      _
    $region35: #{tpu_custom_call.1} parent=1 // pred_check_branch
      %322 = sbr.rel (0) target = $region37
    $region36: #{tpu_custom_call.1} parent=1 // pred_region
      _
    $region37: #{tpu_custom_call.1} parent=1 // pred_fallthru
      _
    // Predicated region
    $region38: #{tpu_custom_call.1} parent=1 // pred_check
      _
    $region39: #{tpu_custom_call.1} parent=1 // pred_check_branch
      %324 = sbr.rel (0) target = $region41
    $region40: #{tpu_custom_call.1} parent=1 // pred_region
      _
    $region41: #{tpu_custom_call.1} parent=1 // pred_fallthru
      _
    // Predicated region
    $region42: #{tpu_custom_call.1} parent=1 // pred_check
      _
    $region43: #{tpu_custom_call.1} parent=1 // pred_check_branch
      %326 = sbr.rel (0) target = $region45
    $region44: #{tpu_custom_call.1} parent=1 // pred_region
      _
    $region45: #{tpu_custom_call.1} parent=1 // pred_fallthru
      _
    %327 = vsyncpa [#allocation10], 1

</llo_original>
